<compile_context>
chip_gen: v7x
topology: tpu7x:2x2x1
jax: 0.10.0
libtpu: 0.0.40
codegen_flags: <defaults>
</compile_context>

<pallas_src>
import jax
import jax.numpy as jnp
from jax.experimental import pallas as pl
from jax.experimental.pallas import tpu as pltpu

_LANE = 128


def _round_up(n, m):
    return ((n + m - 1) // m) * m


def _sublane_mult(*itemsizes):
    # Native sublane packing per vreg: f32 -> 8, bf16/f16 -> 16, int8/bool -> 32.
    return max(max(8, 32 // max(1, int(i))) for i in itemsizes)


def _vmem_limit_and_budget():
    """Per-generation scoped-VMEM limit to request and the working-set budget
    (bytes) the tile picker may fill (leaves ~25% headroom for compiler scratch)."""
    try:
        cap = int(pltpu.get_tpu_info().vmem_capacity_bytes)
    except Exception:
        cap = 64 * 1024 * 1024          # assume the smallest per-core VMEM (v7x)
    limit = min(max(cap // 2, 16 * 1024 * 1024), 64 * 1024 * 1024)
    budget = (limit * 3) // 4
    return limit, budget


def _pick_tiles(B, H, per_elem_bytes, sub_req, budget, max_block_elems=None):
    """Pick (TB, TH) for [*, B, H] blocks.

    TH is a multiple of 128 (or == H when H < 128); TB is a multiple of
    `sub_req` (or == B).  TB*TH*per_elem_bytes stays under `budget` (the
    per-element cost already includes double buffering of every operand)."""
    max_elems = budget // per_elem_bytes
    max_elems = max(max_elems, sub_req * _LANE)              # always-legal minimum
    if max_block_elems is not None:
        max_elems = max(min(max_elems, max_block_elems), sub_req * _LANE)

    # Lane (last) dim: lane-dense, multiple of 128, capped by the budget.
    if H <= _LANE:
        TH = H
    else:
        TH = (H // _LANE) * _LANE
        TH = min(TH, max(_LANE, (max_elems // sub_req) // _LANE * _LANE))

    # Sublane (second-to-last) dim.
    tb_cap = max(1, max_elems // TH)
    if tb_cap >= B:
        TB = B                                               # full batch (always legal)
    else:
        TB = max(sub_req, (tb_cap // sub_req) * sub_req)

    # Ensure the two "parallel" grid axes have >= 2 steps when the problem is big
    # enough, so v7x's second TensorCore is not idle (no effect on v5e/v6e).
    if pl.cdiv(B, TB) * pl.cdiv(H, TH) < 2:
        if H > _LANE and TH >= 2 * _LANE:
            TH = _round_up(pl.cdiv(H, 2), _LANE)
        elif B >= 2 * sub_req:
            TB = _round_up(pl.cdiv(B, 2), sub_req)
    return TB, TH


def _specs_and_grid(S, B, H, TB, TH):
    grid = (pl.cdiv(B, TB), pl.cdiv(H, TH), S)               # S innermost
    state_spec = pl.BlockSpec((pl.Squeezed(), TB, TH), lambda b, h, s: (s, b, h))
    input_spec = pl.BlockSpec((TB, TH), lambda b, h, s: (b, h))   # resident across S
    leak_spec = pl.BlockSpec((1, TH), lambda b, h, s: (0, h))
    return grid, state_spec, input_spec, leak_spec


# ---------------------------------------------------------------------------
# Pallas kernels (pure VPU elementwise; HBM-bandwidth bound by construction)
# ---------------------------------------------------------------------------
def _update_kernel(state_ref, input_ref, leak_ref, out_ref):
    # out = state * leak + input     (leak is a (1, TH) row, broadcast over sublanes)
    out_ref[...] = (state_ref[...] * leak_ref[...] + input_ref[...]).astype(out_ref.dtype)


def _update_reset_float_kernel(state_ref, input_ref, leak_ref, reset_ref, out_ref):
    # Exact reference formula for a floating-point reset tensor (reset stays in
    # its own dtype; only the final result is cast to the state dtype).
    out_ref[...] = (state_ref[...] * leak_ref[...] * (1 - reset_ref[...])
                    + input_ref[...]).astype(out_ref.dtype)


def _update_reset_spike_kernel(state_ref, input_ref, leak_ref, reset_ref, out_ref):
    # reset is an int8 {0,1} spike mask: select instead of widen + multiply.
    inp = input_ref[...]
    decayed = state_ref[...] * leak_ref[...] + inp
    out_ref[...] = jnp.where(reset_ref[...] != 0, inp, decayed).astype(out_ref.dtype)


# ---------------------------------------------------------------------------
# Wrappers
# ---------------------------------------------------------------------------
# TODO(synk): for shapes with H << 128 and very large B, a flattened [S, B*H]
# lane layout would pack lanes better; not handled here to keep the path simple.
def pallas_update(state, input_, leak, *, in_place=False, max_block_elems=None):
    """state: [S, B, H], input_: [B, H], leak: [H] -> [S, B, H]  (state*leak + input_)."""
    S, B, H = state.shape
    dt = state.dtype
    itemsize = jnp.dtype(dt).itemsize
    input2 = input_.astype(dt)
    leak2 = leak.astype(dt).reshape(1, H)

    limit, budget = _vmem_limit_and_budget()
    budget -= 2 * 8 * _round_up(H, _LANE) * itemsize          # resident leak block
    sub_req = _sublane_mult(itemsize)
    per_elem = 2 * 3 * itemsize                                # state+input+out, x2 buffers
    TB, TH = _pick_tiles(B, H, per_elem, sub_req, budget, max_block_elems)
    grid, state_spec, input_spec, leak_spec = _specs_and_grid(S, B, H, TB, TH)

    return pl.pallas_call(
        _update_kernel,
        out_shape=jax.ShapeDtypeStruct((S, B, H), dt),
        grid=grid,
        in_specs=[state_spec, input_spec, leak_spec],
        out_specs=pl.BlockSpec((pl.Squeezed(), TB, TH), lambda b, h, s: (s, b, h)),
        input_output_aliases=({0: 0} if in_place else {}),
        compiler_params=pltpu.CompilerParams(
            dimension_semantics=("parallel", "parallel", "arbitrary"),
            vmem_limit_bytes=limit),
    )(state, input2, leak2)


def pallas_update_reset(state, input_, leak, reset, thresh=None, *,
                        in_place=False, max_block_elems=None):
    """out = state*leak*(1-reset) + input_.
    NOTE: `thresh` is accepted but unused, exactly like the PyTorch reference."""
    S, B, H = state.shape
    dt = state.dtype
    itemsize = jnp.dtype(dt).itemsize
    input2 = input_.astype(dt)
    leak2 = leak.astype(dt).reshape(1, H)

    if jnp.issubdtype(reset.dtype, jnp.floating):
        # General float path: exact multiplicative formula, reset kept in its own dtype.
        reset2, kernel = reset, _update_reset_float_kernel
        r_item = jnp.dtype(reset.dtype).itemsize
    else:
        # Spike path (bool/int {0,1}): 1 byte/elem in HBM, select in the kernel.
        if jnp.dtype(reset.dtype).itemsize == 1 and reset.dtype != jnp.bool_:
            reset2 = reset                                   # already int8/uint8
        else:
            reset2 = reset.astype(jnp.int8)
        kernel, r_item = _update_reset_spike_kernel, 1

    limit, budget = _vmem_limit_and_budget()
    budget -= 2 * 8 * _round_up(H, _LANE) * itemsize
    sub_req = _sublane_mult(itemsize, r_item)
    per_elem = 2 * (3 * itemsize + r_item)
    TB, TH = _pick_tiles(B, H, per_elem, sub_req, budget, max_block_elems)
    grid, state_spec, input_spec, leak_spec = _specs_and_grid(S, B, H, TB, TH)

    return pl.pallas_call(
        kernel,
        out_shape=jax.ShapeDtypeStruct((S, B, H), dt),
        grid=grid,
        in_specs=[state_spec, input_spec, leak_spec, state_spec],   # reset tiles like state
        out_specs=pl.BlockSpec((pl.Squeezed(), TB, TH), lambda b, h, s: (s, b, h)),
        input_output_aliases=({0: 0} if in_place else {}),
        compiler_params=pltpu.CompilerParams(
            dimension_semantics=("parallel", "parallel", "arbitrary"),
            vmem_limit_bytes=limit),
    )(state, input2, leak2, reset2)


# ---------------------------------------------------------------------------
# BaseNeuron (JAX/Pallas port of the PyTorch module)
# ---------------------------------------------------------------------------
class BaseNeuron:
    def __init__(self, state_size, fixed_params, learnable_params):
        assert set(fixed_params.keys()).isdisjoint(learnable_params.keys()), \
            "A parameter cannot be both fixed and learnable"
        self.state_size = state_size
        self.reset_parameters(fixed_params, learnable_params)

    def forward(self, state, input_, _):
        state = state if state is not None else self.reset_state(input_)
        return self.activation(state, input_, _)

    def activation(self, state, input_, _):
        # TODO(synk): `activation` is abstract (NotImplementedError) in the reference;
        # dispatch to the base-class `update` hot path so the Pallas kernel is exercised.
        return self.update(state, input_, self.leak)

    @staticmethod
    def update(state, input_, leak):
        return pallas_update(state, input_, leak)

    @staticmethod
    def update_reset(state, input_, leak, reset, thresh):
        return pallas_update_reset(state, input_, leak, reset, thresh)

    def reset_state(self, input_):
        return jnp.zeros((self.state_size, *input_.shape), dtype=input_.dtype)

    def reset_parameters(self, fixed_params, learnable_params):
        assert set(fixed_params.keys()).isdisjoint(learnable_params.keys()), \
            "A parameter cannot be both fixed and learnable"
        for name, data in fixed_params.items():
            setattr(self, name, data)          # buffer
        for name, data in learnable_params.items():
            setattr(self, name, data)          # "learnable" parameter


# ---------------------------------------------------------------------------
# Demo / self-test
# ---------------------------------------------------------------------------
if __name__ == "__main__":
    key = jax.random.PRNGKey(0)
    (k_in, k_leak, k_state, k_reset,
     k_in2, k_leak2, k_state2, k_reset2,
     k_in3, k_leak3, k_state3, k_reset3) = jax.random.split(key, 12)

    batch, hidden, state_size = 2, 32, 2
    leak = jax.random.uniform(k_leak, (hidden,), jnp.float32, 0.8, 0.99)
    neuron = BaseNeuron(state_size=state_size,
                        fixed_params={"leak": leak}, learnable_params={})

    input_ = jax.random.normal(k_in, (batch, hidden), jnp.float32)
    state = jax.random.normal(k_state, (state_size, batch, hidden), jnp.float32)
    reset = jax.random.uniform(k_reset, (state_size, batch, hidden)) > 0.5   # bool spikes

    ref0 = jnp.broadcast_to(input_[None], (state_size, batch, hidden))
    ref1 = state * leak[None, None, :] + input_[None]
    ref2 = state * leak[None, None, :] * (1.0 - reset.astype(jnp.float32)) + input_[None]

    out0 = jax.block_until_ready(neuron.forward(None, input_, None))     # zero state path
    out1 = jax.block_until_ready(neuron.forward(state, input_, None))    # update path
    out2 = jax.block_until_ready(BaseNeuron.update_reset(state, input_, leak, reset, 1.0))
    out2f = jax.block_until_ready(
        BaseNeuron.update_reset(state, input_, leak, reset.astype(jnp.float32), 1.0))

    assert jnp.allclose(out0, ref0, atol=1e-6), "update (zero state) mismatch"
    assert jnp.allclose(out1, ref1, atol=1e-6), "update mismatch"
    assert jnp.allclose(out2, ref2, atol=1e-6), "update_reset (spike mask) mismatch"
    assert jnp.allclose(out2f, ref2, atol=1e-6), "update_reset (float reset) mismatch"
    assert out0.shape == (state_size, batch, hidden) and out0.dtype == input_.dtype

    # Larger shape with a forced multi-step (b,h) grid (exercises tiling + megacore split).
    B2, H2, S2 = 16, 512, 2
    leak2v = jax.random.uniform(k_leak2, (H2,), jnp.float32, 0.8, 0.99)
    input2v = jax.random.normal(k_in2, (B2, H2), jnp.float32)
    state2v = jax.random.normal(k_state2, (S2, B2, H2), jnp.float32)
    reset2v = jax.random.uniform(k_reset2, (S2, B2, H2)) > 0.5
    ref3 = state2v * leak2v[None, None, :] + input2v[None]
    ref4 = state2v * leak2v[None, None, :] * (1.0 - reset2v.astype(jnp.float32)) + input2v[None]
    out3 = jax.block_until_ready(pallas_update(state2v, input2v, leak2v, max_block_elems=2048))
    out4 = jax.block_until_ready(
        pallas_update_reset(state2v, input2v, leak2v, reset2v, 1.0, max_block_elems=2048))
    assert jnp.allclose(out3, ref3, atol=1e-6), "tiled update mismatch"
    assert jnp.allclose(out4, ref4, atol=1e-6), "tiled update_reset mismatch"

    # In-place aliasing on a fresh (donatable) temporary.
    tmp_state = state2v + 0.0
    out3ip = jax.block_until_ready(pallas_update(tmp_state, input2v, leak2v, in_place=True))
    del tmp_state
    assert jnp.allclose(out3ip, ref3, atol=1e-6), "in-place update mismatch"

    # Ragged lane dimension (H not a multiple of 128): pl.cdiv grid, masked last block.
    B3, H3, S3 = 4, 200, 3
    leak3 = jax.random.uniform(k_leak3, (H3,), jnp.float32, 0.8, 0.99)
    input3 = jax.random.normal(k_in3, (B3, H3), jnp.float32)
    state3 = jax.random.normal(k_state3, (S3, B3, H3), jnp.float32)
    reset3 = jax.random.uniform(k_reset3, (S3, B3, H3)) > 0.5
    ref5 = state3 * leak3[None, None, :] + input3[None]
    ref6 = state3 * leak3[None, None, :] * (1.0 - reset3.astype(jnp.float32)) + input3[None]
    out5 = jax.block_until_ready(pallas_update(state3, input3, leak3))
    out6 = jax.block_until_ready(pallas_update_reset(state3, input3, leak3, reset3, 1.0))
    assert jnp.allclose(out5, ref5, atol=1e-6), "ragged update mismatch"
    assert jnp.allclose(out6, ref6, atol=1e-6), "ragged update_reset mismatch"

    # bf16 path (same kernels, halved HBM traffic) — loose tolerance vs f32 reference.
    out_bf = jax.block_until_ready(
        pallas_update(state.astype(jnp.bfloat16), input_.astype(jnp.bfloat16), leak))
    assert out_bf.dtype == jnp.bfloat16
    assert jnp.allclose(out_bf.astype(jnp.float32), ref1, atol=5e-2, rtol=5e-2), \
        "bf16 update mismatch"

    print("KERNEL_OK")
</pallas_src>

<mosaic_0001>
module attributes {stable_mosaic.version = 11 : i64} {
  func.func @_update_kernel(%arg0: i32, %arg1: i32, %arg2: i32, %arg3: memref<1x2x32xf32, #tpu.memory_space<vmem>>, %arg4: memref<2x32xf32, #tpu.memory_space<vmem>>, %arg5: memref<1x32xf32, #tpu.memory_space<vmem>>, %arg6: memref<1x2x32xf32, #tpu.memory_space<vmem>>) attributes {dimension_semantics = [#tpu.dimension_semantics<parallel>, #tpu.dimension_semantics<parallel>, #tpu.dimension_semantics<arbitrary>], iteration_bounds = array<i64: 1, 1, 2>, scalar_prefetch = 0 : i64, scratch_operands = 0 : i64, tpu.core_type = #tpu.core_type<tc>, window_params = [{transform_indices = @transform_0, window_bounds = array<i64: 1, 2, 32>}, {transform_indices = @transform_1, window_bounds = array<i64: 2, 32>}, {transform_indices = @transform_2, window_bounds = array<i64: 1, 32>}, {transform_indices = @transform_3, window_bounds = array<i64: 1, 2, 32>}]} {
    %c0 = arith.constant 0 : index
    %c0_0 = arith.constant 0 : index
    %c0_1 = arith.constant 0 : index
    %0 = vector.load %arg3[%c0, %c0_0, %c0_1] : memref<1x2x32xf32, #tpu.memory_space<vmem>>, vector<1x2x32xf32>
    %1 = vector.shape_cast %0 : vector<1x2x32xf32> to vector<2x32xf32>
    %c0_2 = arith.constant 0 : index
    %c0_3 = arith.constant 0 : index
    %2 = vector.load %arg5[%c0_2, %c0_3] : memref<1x32xf32, #tpu.memory_space<vmem>>, vector<1x32xf32>
    %3 = vector.broadcast %2 : vector<1x32xf32> to vector<2x32xf32>
    %4 = arith.mulf %1, %3 : vector<2x32xf32>
    %c0_4 = arith.constant 0 : index
    %c0_5 = arith.constant 0 : index
    %5 = vector.load %arg4[%c0_4, %c0_5] : memref<2x32xf32, #tpu.memory_space<vmem>>, vector<2x32xf32>
    %6 = arith.addf %4, %5 : vector<2x32xf32>
    %c0_6 = arith.constant 0 : index
    %c0_7 = arith.constant 0 : index
    %c0_8 = arith.constant 0 : index
    %7 = vector.load %arg6[%c0_6, %c0_7, %c0_8] : memref<1x2x32xf32, #tpu.memory_space<vmem>>, vector<1x2x32xf32>
    %8 = vector.shape_cast %7 : vector<1x2x32xf32> to vector<2x32xf32>
    %9 = vector.shape_cast %6 : vector<2x32xf32> to vector<1x2x32xf32>
    tpu.vector_store %arg6[%c0_6, %c0_7, %c0_8], %9 {strides = array<i32>} : memref<1x2x32xf32, #tpu.memory_space<vmem>>, vector<1x2x32xf32>,
    return
  }
  func.func @transform_0(%arg0: i32, %arg1: i32, %arg2: i32) -> (i32, i32, i32) {
    %c0_i32 = arith.constant 0 : i32
    return %arg2, %arg0, %arg1 : i32, i32, i32
  }
  func.func @transform_1(%arg0: i32, %arg1: i32, %arg2: i32) -> (i32, i32) {
    %c0_i32 = arith.constant 0 : i32
    return %arg0, %arg1 : i32, i32
  }
  func.func @transform_2(%arg0: i32, %arg1: i32, %arg2: i32) -> (i32, i32) {
    %c0_i32 = arith.constant 0 : i32
    %c0_i32_0 = arith.constant 0 : i32
    return %c0_i32, %arg1 : i32, i32
  }
  func.func @transform_3(%arg0: i32, %arg1: i32, %arg2: i32) -> (i32, i32, i32) {
    %c0_i32 = arith.constant 0 : i32
    return %arg2, %arg0, %arg1 : i32, i32, i32
  }
}

</mosaic_0001>

<llo_original>
// kernel: tpu_custom_call.1
$region0: #{tpu_custom_call.1}
  #allocation0 [shape = 'u32[]', space=smem, size = 0x4, offset = 0x4, fixed_abs, tag = 'smem constant byte address 0x4 - core index']
  #allocation1 [shape = 'u32[144,128]{1,0:T(1,128)}', space=vmem, size = 0x12000, scoped, tag = 'internal scratch']
  %s0 = inlined_call_operand.hbm [shape: f32[2,2,32], index: 0, kind: input, shape index: {}]
  %s1 = inlined_call_operand.vmem [shape: f32[2,32], index: 1, kind: input, shape index: {}]
  %s2 = inlined_call_operand.vmem [shape: f32[1,32], index: 2, kind: input, shape index: {}]
  %s3 = inlined_call_operand.hbm [shape: f32[2,2,32], index: 3, kind: output, shape index: {}]
  %s4 = sld [smem:[#allocation0]]
  $region49: #{tpu_custom_call.1} parent=0
    _
  %s6 = ssub.s32 1, %s4
  %s7 = scalar_select 0, %s6, %s4
  $region1: #{tpu_custom_call.1} parent=0
    #allocation2 [shape = 'u8[2048]{0}', space=vmem, size = 0x800, scoped, tag = 'input window, operand 0']
    #allocation3 [shape = 's32[2]{0}', space=sflag, size = 0x8, scoped, tag = 'scoped memory for tpu_custom_call.1']
    #allocation4 [shape = 's32[2]{0}', space=sflag, size = 0x8, scoped, tag = 'scoped memory for tpu_custom_call.1']
    #allocation5 [shape = 'u8[2048]{0}', space=vmem, size = 0x800, scoped, tag = 'output window, operand 0']
    %8 = vsyncpa [#allocation3], 0
    %s9 = scalar_lea.sflag [#allocation3], 1
    %10 = vsyncpa %s9, 0
    %11 = vsyncpa [#allocation4], 0
    %s12 = scalar_lea.sflag [#allocation4], 1
    %13 = vsyncpa %s12, 0
    loop: start=0, step=1, limit=4
    $region2: #{tpu_custom_call.1} parent=1 // loop_pre_header
      _
    $region3: #{tpu_custom_call.1} parent=1 // loop_header
      %s15 = sphi 0, %s19
      %p16 = scmp.ge.s32.totalorder %s15, 4
      %s22 = sphi 0, %s41
      %s23 = sphi 0, %s37
      %s24 = sphi 0, %s33
      %s25 = sphi 0, %s22
      %s26 = sphi 0, %s23
      %s27 = sphi 0, %s24
      %s28 = sphi 0, %s25
      %s29 = sphi 0, %s26
      %s30 = sphi 0, %s27
      %s48 = sphi 0, %s50
      %s51 = sphi 0, %s48
      %s52 = sphi 0, %s51
      %s68 = sphi 0, %s52
      %s76 = sphi 0, %s78
      %s79 = sphi 0, %s76
      %s80 = sphi 0, %s79
      %s96 = sphi 0, %s80
      %s102 = sphi 0, %s104
      %s105 = sphi 0, %s102
      %s106 = sphi 0, %s105
      %s122 = sphi 0, %s106
      %s132 = sphi 0, %s134
      %s135 = sphi 0, %s132
      %s136 = sphi 0, %s135
      %s152 = sphi 0, %s136
    $region4: #{tpu_custom_call.1} parent=1 // loop_header_branch
      %18 = sbr.rel (%p16) target = $region8
    $region5: #{tpu_custom_call.1} parent=1 // loop_body
      %s20 = ssub.s32 %s15, 1
      %s21 = ssub.s32 %s15, 2
      %s31 = sadd.s32 1, %s24
      %p32 = scmp.ge.s32.totalorder %s31, 2
      %s33 = scalar_select %p32, 0, %s31
      %s34 = sadd.s32 1, %s23
      %s35 = scalar_select %p32, %s34, %s23
      %p36 = scmp.ge.s32.totalorder %s35, 1
      %s37 = scalar_select %p36, 0, %s35
      %s38 = sadd.s32 1, %s22
      %s39 = scalar_select %p36, %s38, %s22
      %p40 = scmp.ge.s32.totalorder %s39, 1
      %s41 = scalar_select %p40, 0, %s39
      %s42 = ssub.s32 %s24, %s33
      %s43 = ssub.s32 %s22, %s41
      %s44 = sor.u32 %s42, %s43
      %s45 = ssub.s32 %s23, %s37
      %s46 = sor.u32 %s44, %s45
      %p47 = scmp.eq.s32.totalorder %s46, 0
      %s49 = sadd.s32 %s48, 1
      %s50 = scalar_select %p47, %s48, %s49
      %p53 = pneg %p47
      %p54 = scmp.eq.s32.totalorder %s15, 1
      %p55 = por %p53, %p54
      %p56 = scmp.ne.s32.totalorder %s48, %s51
      %p57 = scmp.eq.s32.totalorder %s15, 0
      %p58 = por %p56, %p57
      %p59 = scmp.ne.s32.totalorder %s48, %s51
      %p60 = scmp.eq.s32.totalorder %s20, 1
      %p61 = por %p59, %p60
      %p62 = scmp.ne.s32.totalorder %s51, %s52
      %p63 = scmp.eq.s32.totalorder %s20, 0
      %p64 = por %p62, %p63
      %p65 = scmp.ne.s32.totalorder %s51, %s52
      %p66 = scmp.eq.s32.totalorder %s21, 1
      %p67 = por %p65, %p66
      %p69 = scmp.ne.s32.totalorder %s52, %s68
      %p70 = scmp.eq.s32.totalorder %s21, 0
      %p71 = por %p69, %p70
      %s72 = ssub.s32 %s22, %s41
      %s73 = ssub.s32 %s23, %s37
      %s74 = sor.u32 %s72, %s73
      %p75 = scmp.eq.s32.totalorder %s74, 0
      %s77 = sadd.s32 %s76, 1
      %s78 = scalar_select %p75, %s76, %s77
      %p81 = pneg %p75
      %p82 = scmp.eq.s32.totalorder %s15, 1
      %p83 = por %p81, %p82
      %p84 = scmp.ne.s32.totalorder %s76, %s79
      %p85 = scmp.eq.s32.totalorder %s15, 0
      %p86 = por %p84, %p85
      %p87 = scmp.ne.s32.totalorder %s76, %s79
      %p88 = scmp.eq.s32.totalorder %s20, 1
      %p89 = por %p87, %p88
      %p90 = scmp.ne.s32.totalorder %s79, %s80
      %p91 = scmp.eq.s32.totalorder %s20, 0
      %p92 = por %p90, %p91
      %p93 = scmp.ne.s32.totalorder %s79, %s80
      %p94 = scmp.eq.s32.totalorder %s21, 1
      %p95 = por %p93, %p94
      %p97 = scmp.ne.s32.totalorder %s80, %s96
      %p98 = scmp.eq.s32.totalorder %s21, 0
      %p99 = por %p97, %p98
      %s100 = ssub.s32 %s23, %s37
      %p101 = scmp.eq.s32.totalorder %s100, 0
      %s103 = sadd.s32 %s102, 1
      %s104 = scalar_select %p101, %s102, %s103
      %p107 = pneg %p101
      %p108 = scmp.eq.s32.totalorder %s15, 1
      %p109 = por %p107, %p108
      %p110 = scmp.ne.s32.totalorder %s102, %s105
      %p111 = scmp.eq.s32.totalorder %s15, 0
      %p112 = por %p110, %p111
      %p113 = scmp.ne.s32.totalorder %s102, %s105
      %p114 = scmp.eq.s32.totalorder %s20, 1
      %p115 = por %p113, %p114
      %p116 = scmp.ne.s32.totalorder %s105, %s106
      %p117 = scmp.eq.s32.totalorder %s20, 0
      %p118 = por %p116, %p117
      %p119 = scmp.ne.s32.totalorder %s105, %s106
      %p120 = scmp.eq.s32.totalorder %s21, 1
      %p121 = por %p119, %p120
      %p123 = scmp.ne.s32.totalorder %s106, %s122
      %p124 = scmp.eq.s32.totalorder %s21, 0
      %p125 = por %p123, %p124
      %s126 = ssub.s32 %s24, %s33
      %s127 = ssub.s32 %s22, %s41
      %s128 = sor.u32 %s126, %s127
      %s129 = ssub.s32 %s23, %s37
      %s130 = sor.u32 %s128, %s129
      %p131 = scmp.eq.s32.totalorder %s130, 0
      %s133 = sadd.s32 %s132, 1
      %s134 = scalar_select %p131, %s132, %s133
      %p137 = pneg %p131
      %p138 = scmp.eq.s32.totalorder %s15, 1
      %p139 = por %p137, %p138
      %p140 = scmp.ne.s32.totalorder %s132, %s135
      %p141 = scmp.eq.s32.totalorder %s15, 0
      %p142 = por %p140, %p141
      %p143 = scmp.ne.s32.totalorder %s132, %s135
      %p144 = scmp.eq.s32.totalorder %s20, 1
      %p145 = por %p143, %p144
      %p146 = scmp.ne.s32.totalorder %s135, %s136
      %p147 = scmp.eq.s32.totalorder %s20, 0
      %p148 = por %p146, %p147
      %p149 = scmp.ne.s32.totalorder %s135, %s136
      %p150 = scmp.eq.s32.totalorder %s21, 1
      %p151 = por %p149, %p150
      %p153 = scmp.ne.s32.totalorder %s136, %s152
      %p154 = scmp.eq.s32.totalorder %s21, 0
      %p155 = por %p153, %p154
      %p156 = scmp.le.s32.totalorder 1, %s15
      %p157 = scmp.lt.s32.totalorder %s15, 3
      %p158 = pnand %p156, %p157
      %p159 = pneg %p158
      // Predicated region
      $region9: #{tpu_custom_call.1} parent=5 // pred_check
        _
      $region10: #{tpu_custom_call.1} parent=5 // pred_check_branch
        %161 = sbr.rel (%p158) target = $region12
      $region11: #{tpu_custom_call.1} parent=5 // pred_region
        %s162 = ssub.s32 %s15, 1
        // Predicated region
        $region13: #{tpu_custom_call.1} parent=11 // pred_check
          %p163 = pneg %p92
        $region14: #{tpu_custom_call.1} parent=11 // pred_check_branch
          %165 = sbr.rel (%p163) target = $region16
        $region15: #{tpu_custom_call.1} parent=11 // pred_region
          %p166 = scmp.lt.s32.totalorder %s25, 0
          %s167 = scalar_select %p166, %s25, 0
          %p168 = scmp.lt.s32.totalorder %s26, 0
          %s169 = scalar_select %p168, %s26, 0
          %s170 = sadd.s32 %s169, %s167
          %s171 = smul.addr %s170, 2
          %s172 = scalar_lea.vmem %s1, %s171
        $region16: #{tpu_custom_call.1} parent=11 // pred_fallthru
          _
        // Predicated region
        $region17: #{tpu_custom_call.1} parent=11 // pred_check
          %p173 = pneg %p118
        $region18: #{tpu_custom_call.1} parent=11 // pred_check_branch
          %175 = sbr.rel (%p173) target = $region20
        $region19: #{tpu_custom_call.1} parent=11 // pred_region
          %p176 = scmp.lt.s32.totalorder %s26, 0
          %s177 = scalar_select %p176, %s26, 0
          %s178 = scalar_lea.vmem %s2, %s177
        $region20: #{tpu_custom_call.1} parent=11 // pred_fallthru
          _
      $region12: #{tpu_custom_call.1} parent=5 // pred_fallthru
        _
      %p179 = scmp.lt.s32.totalorder %s15, 2
      // Predicated region
      $region21: #{tpu_custom_call.1} parent=5 // pred_check
        %p180 = pneg %p179
      $region22: #{tpu_custom_call.1} parent=5 // pred_check_branch
        %182 = sbr.rel (%p180) target = $region24
      $region23: #{tpu_custom_call.1} parent=5 // pred_region
        // Predicated region
        $region25: #{tpu_custom_call.1} parent=23 // pred_check
          %p183 = pneg %p58
        $region26: #{tpu_custom_call.1} parent=23 // pred_check_branch
          %185 = sbr.rel (%p183) target = $region28
        $region27: #{tpu_custom_call.1} parent=23 // pred_region
          %s186 = sand.u32 %s48, 1
          %s187 = scalar_lea.sflag [#allocation3], %s186
          %s188 = sand.u32 %s48, 1
          %s189 = smul.addr %s188, 2
          %s190 = scalar_lea.vmem [#allocation2], %s189
          %s192 = ssub.s32 32, 32
          %193 = vsyncadd %s187, %s192
          %s194 = sadd.s32 %s23, %s22
          %s195 = sadd.s32 %s194, %s24
          %s196 = smul.addr %s195, 32
          %s197 = scalar_lea.hbm %s0, %s196
          %s199 = sshll.u32 %s190, 4
          %s200 = int_to_ptr.vmem [resolvable:$true] %s199
          %202 = dma.hbm_to_vmem [thread:$0]  %s197, 32, %s200, %s187
        $region28: #{tpu_custom_call.1} parent=23 // pred_fallthru
          _
      $region24: #{tpu_custom_call.1} parent=5 // pred_fallthru
        _
      %p203 = scmp.le.s32.totalorder 1, %s15
      %p204 = scmp.lt.s32.totalorder %s15, 3
      %p205 = pnand %p203, %p204
      %p206 = pneg %p205
      // Predicated region
      $region29: #{tpu_custom_call.1} parent=5 // pred_check
        _
      $region30: #{tpu_custom_call.1} parent=5 // pred_check_branch
        %208 = sbr.rel (%p205) target = $region32
      $region31: #{tpu_custom_call.1} parent=5 // pred_region
        %s209 = ssub.s32 %s15, 1
        %s210 = sand.u32 %s51, 1
        %s211 = scalar_lea.sflag [#allocation3], %s210
        %s212 = sand.u32 %s51, 1
        %s213 = smul.addr %s212, 2
        %s214 = scalar_lea.vmem [#allocation2], %s213
        // Predicated region
        $region33: #{tpu_custom_call.1} parent=31 // pred_check
          %p215 = pneg %p64
        $region34: #{tpu_custom_call.1} parent=31 // pred_check_branch
          %217 = sbr.rel (%p215) target = $region36
        $region35: #{tpu_custom_call.1} parent=31 // pred_region
          %218 = dma.done %s211, 32
        $region36: #{tpu_custom_call.1} parent=31 // pred_fallthru
          _
        %s219 = sand.u32 %s51, 1
        %s220 = scalar_lea.sflag [#allocation3], %s219
        %s221 = sand.u32 %s51, 1
        %s222 = smul.addr %s221, 2
        %s223 = scalar_lea.vmem [#allocation2], %s222
        %p224 = pneg %p64
        %p225 = pneg %p61
        %p226 = scmp.lt.s32.totalorder %s25, 0
        %s227 = scalar_select %p226, %s25, 0
        %p228 = scmp.lt.s32.totalorder %s26, 0
        %s229 = scalar_select %p228, %s26, 0
        %s230 = sadd.s32 %s229, %s227
        %s231 = smul.addr %s230, 2
        %s232 = scalar_lea.vmem %s1, %s231
        %p233 = pneg %p92
        %p234 = pneg %p89
        %p235 = scmp.lt.s32.totalorder %s26, 0
        %s236 = scalar_select %p235, %s26, 0
        %s237 = scalar_lea.vmem %s2, %s236
        %p238 = pneg %p118
        %p239 = pneg %p115
        %p240 = pneg %p148
        %p241 = pneg %p145
        %s242 = sand.u32 %s135, 1
        %s243 = scalar_lea.sflag [#allocation4], %s242
        %s244 = sand.u32 %s135, 1
        %s245 = smul.addr %s244, 2
        %s246 = scalar_lea.vmem [#allocation5], %s245
        %p247 = scmp.lt.s32.totalorder %s25, 0
        %s248 = scalar_select %p247, %s25, 0
        %p249 = scmp.lt.s32.totalorder %s26, 0
        %s250 = scalar_select %p249, %s26, 0
        %s251 = sadd.s32 %s250, %s248
        %s252 = smul.addr %s251, 2
        %s253 = scalar_lea.vmem %s1, %s252
        %p254 = scmp.lt.s32.totalorder %s26, 0
        %s255 = scalar_select %p254, %s26, 0
        %s256 = scalar_lea.vmem %s2, %s255
        %v257 = vld [vmem:[%s214] sm:$0x3]
        %v258 = vld [vmem:[%s256] sm:$0x1]
        %v260 = vlaneseq
        %v261 = vshrl.u32 %v260, 7
        %v262 = vsub.s32 0, %v261
        %v263 = vrot.slane %v258, %v262
        %v265 = vmul.f32 %v257, %v263
        %v266 = vld [vmem:[%s253] sm:$0x3]
        %v267 = vadd.f32 %v265, %v266
        %vm268 = vcmask 254976
        %269 = vst.msk [vmem:[%s246] sm:$0x3] %vm268, %v267
        %s270 = sand.u32 %s135, 1
        %s271 = scalar_lea.sflag [#allocation4], %s270
        %s272 = sand.u32 %s135, 1
        %s273 = smul.addr %s272, 2
        %s274 = scalar_lea.vmem [#allocation5], %s273
        // Predicated region
        $region37: #{tpu_custom_call.1} parent=31 // pred_check
          %p275 = pneg %p145
        $region38: #{tpu_custom_call.1} parent=31 // pred_check_branch
          %277 = sbr.rel (%p275) target = $region40
        $region39: #{tpu_custom_call.1} parent=31 // pred_region
          %s279 = ssub.s32 32, 32
          %280 = vsyncadd %s271, %s279
          %s281 = sadd.s32 %s26, %s25
          %s282 = sadd.s32 %s281, %s27
          %s283 = smul.addr %s282, 32
          %s284 = scalar_lea.hbm %s3, %s283
          %s286 = sshll.u32 %s274, 4
          %s287 = int_to_ptr.vmem [resolvable:$true] %s286
          %289 = dma.vmem_to_hbm [thread:$0]  %s287, 32, %s284, %s271
        $region40: #{tpu_custom_call.1} parent=31 // pred_fallthru
          _
      $region32: #{tpu_custom_call.1} parent=5 // pred_fallthru
        _
      %p290 = scmp.le.s32.totalorder 2, %s15
      // Predicated region
      $region41: #{tpu_custom_call.1} parent=5 // pred_check
        %p291 = pneg %p290
      $region42: #{tpu_custom_call.1} parent=5 // pred_check_branch
        %293 = sbr.rel (%p291) target = $region44
      $region43: #{tpu_custom_call.1} parent=5 // pred_region
        %s294 = ssub.s32 %s15, 2
        // Predicated region
        $region45: #{tpu_custom_call.1} parent=43 // pred_check
          %p295 = pneg %p151
        $region46: #{tpu_custom_call.1} parent=43 // pred_check_branch
          %297 = sbr.rel (%p295) target = $region48
        $region47: #{tpu_custom_call.1} parent=43 // pred_region
          %s298 = sand.u32 %s136, 1
          %s299 = scalar_lea.sflag [#allocation4], %s298
          %s300 = sand.u32 %s136, 1
          %s301 = smul.addr %s300, 2
          %s302 = scalar_lea.vmem [#allocation5], %s301
          %303 = dma.done %s299, 32
        $region48: #{tpu_custom_call.1} parent=43 // pred_fallthru
          _
      $region44: #{tpu_custom_call.1} parent=5 // pred_fallthru
        _
    $region6: #{tpu_custom_call.1} parent=1 // loop_footer
      %s19 = sadd.s32 1, %s15
    $region7: #{tpu_custom_call.1} parent=1 // loop_footer_branch
      %14 = sbr.rel target = $region3
    $region8: #{tpu_custom_call.1} parent=1 // loop_exit
      _
    %304 = vsyncpa [#allocation3], 1
    %s305 = scalar_lea.sflag [#allocation3], 1
    %306 = vsyncpa %s305, 1
    %307 = vsyncpa [#allocation4], 1
    %s308 = scalar_lea.sflag [#allocation4], 1
    %309 = vsyncpa %s308, 1

</llo_original>
